<compile_context>
chip_gen: v6e
topology: v6e:2x2x1
jax: 0.10.0
libtpu: 0.0.40
codegen_flags: <defaults>
</compile_context>

<pallas_src>
import collections
from functools import partial

import jax
import jax.numpy as jnp
from jax.experimental import pallas as pl
from jax.experimental.pallas import tpu as pltpu


DecoderDims = collections.namedtuple(
    "DecoderDims", ["E", "H", "V", "E_pad", "H_pad", "V_pad", "TN", "vmem_limit"])


def _round_up(x, m):
    return (x + m - 1) // m * m


def _cdiv(a, b):
    return (a + b - 1) // b


def _vmem_limit_bytes():
    """Generation-aware VMEM budget: ~3/4 of physical, capped to [32, 100] MiB."""
    try:
        cap = int(pltpu.get_tpu_info().vmem_capacity_bytes)
    except Exception:
        cap = 64 * 1024 * 1024          # conservative (v7x-sized) fallback
    return int(min(max(cap * 3 // 4, 32 * 1024 * 1024), 100 * 1024 * 1024))


def _choose_vocab_tile(V, E_pad, H_pad, B_pad, vmem_limit, tn_max):
    """Pick the largest lane-aligned vocab tile that fits the VMEM budget."""
    V128 = _round_up(V, 128)
    # Residents, conservatively counted as double-buffered (2x):
    resident = 2 * (B_pad * E_pad * 2          # x (bf16)
                    + B_pad * H_pad * 4        # h0 (f32)
                    + E_pad * 3 * H_pad * 2    # W_x (bf16)
                    + H_pad * 3 * H_pad * 2    # W_h (bf16)
                    + 2 * 8 * 3 * H_pad * 4    # biases (sublane-padded f32)
                    + B_pad * H_pad * 4)       # h_new slab block (f32)
    # Per vocab lane, double-buffered: w_out tile + b_out tile + pred tile.
    per_lane = 2 * (H_pad * 2 + 8 * 4 + B_pad * 4)
    avail = vmem_limit - resident - (2 << 20)   # 2 MiB slack for Mosaic scratch
    tn_cap = max(128, (max(avail, 0) // per_lane) // 128 * 128)
    tn = min(tn_max, tn_cap, V128)
    # Keep >= 2 tiles for non-trivial vocabs so a v7x core split has work
    # (costs one ~0.35 us grid step on single-TC chips; negligible).
    if V128 >= 4 * 128:
        tn = min(tn, _round_up(_cdiv(V128, 2), 128))
    # Balance the tiles so padding stays < 128 * n_tiles columns.
    n_tiles = _cdiv(V128, tn)
    tn = _round_up(_cdiv(V128, n_tiles), 128)
    return tn, n_tiles * tn


# --------------------------------------------------------------------------
# Kernel
# --------------------------------------------------------------------------
def _gru_decoder_kernel(x_ref, h0_ref, wx_ref, wh_ref, bx_ref, bh_ref,
                        wout_ref, bout_ref, pred_ref, hnew_ref):
    """One decode step.  Grid: (V_pad // TN,) over vocab tiles ("parallel").

    x_ref   : (B_pad, E_pad)        bf16  embedded token (resident)
    h0_ref  : (B_pad, H_pad)        f32   previous hidden (resident)
    wx_ref  : (E_pad, 3*H_pad)      bf16  input-to-gate weights  [r | z | n]
    wh_ref  : (H_pad, 3*H_pad)      bf16  hidden-to-gate weights [r | z | n]
    bx_ref  : (1, 3*H_pad)          f32   b_ih (gate-aligned)
    bh_ref  : (1, 3*H_pad)          f32   b_hh (gate-aligned)
    wout_ref: (H_pad, TN)           bf16  output-projection tile (streamed)
    bout_ref: (1, TN)               f32   output bias tile (streamed)
    pred_ref: (B_pad, TN)           f32   logits tile
    hnew_ref: (1, B_pad, H_pad)     f32   new hidden, one slab per tile
    """
    Hp = h0_ref.shape[-1]
    h0 = h0_ref[...]

    # GRU cell, recomputed per tile (cheap vs. the w_out stream) so the vocab
    # axis carries no cross-iteration state and can be split across cores.
    gi = jnp.dot(x_ref[...], wx_ref[...],
                 preferred_element_type=jnp.float32) + bx_ref[...]
    gh = jnp.dot(h0.astype(wh_ref.dtype), wh_ref[...],
                 preferred_element_type=jnp.float32) + bh_ref[...]
    r = jax.nn.sigmoid(gi[:, 0 * Hp:1 * Hp] + gh[:, 0 * Hp:1 * Hp])
    z = jax.nn.sigmoid(gi[:, 1 * Hp:2 * Hp] + gh[:, 1 * Hp:2 * Hp])
    # PyTorch GRU: n = tanh(W_in x + b_in + r * (W_hn h + b_hn))
    n = jnp.tanh(gi[:, 2 * Hp:3 * Hp] + r * gh[:, 2 * Hp:3 * Hp])
    h_new = (1.0 - z) * n + z * h0

    # Per-tile hidden slab (injective index map along the parallel axis; every
    # slab holds the same value, wrapper reads slab 0).  Redundant writeback is
    # B_pad*H_pad*4 B per tile — <1% of the w_out tile it rides along with.
    hnew_ref[0] = h_new.astype(hnew_ref.dtype)

    # Output projection for this vocab tile (w_out streamed / double-buffered).
    pred_ref[...] = (
        jnp.dot(h_new.astype(wout_ref.dtype), wout_ref[...],
                preferred_element_type=jnp.float32)
        + bout_ref[...]
    ).astype(pred_ref.dtype)


# --------------------------------------------------------------------------
# Parameter preparation (do this once, outside the per-step decode loop)
# --------------------------------------------------------------------------
def prepare_decoder_params(params, *, tn_max=4096, max_batch=8):
    """Pad / split / cast PyTorch-layout GRU params for the kernel."""
    emb = params["embedding"]                     # (V, E)
    w_ih = params["w_ih"]                         # (E, 3H)  gate order r,z,n
    w_hh = params["w_hh"]                         # (H, 3H)
    b_ih = params["b_ih"].reshape(-1)             # (3H,)
    b_hh = params["b_hh"].reshape(-1)             # (3H,)
    w_out = params["w_out"]                       # (H, V)
    b_out = params["b_out"].reshape(-1)           # (V,)

    V, E = emb.shape
    H = w_hh.shape[0]

    E_pad = _round_up(E, 128)
    H_pad = _round_up(H, 128)
    B_pad_hint = max(8, _round_up(max_batch, 8))
    vmem_limit = _vmem_limit_bytes()
    TN, V_pad = _choose_vocab_tile(V, E_pad, H_pad, B_pad_hint, vmem_limit, tn_max)

    f32, bf16 = jnp.float32, jnp.bfloat16

    # Embedding table: lane-padded feature dim, bf16 (halves HBM bytes).
    emb_p = jnp.zeros((V, E_pad), bf16).at[:, :E].set(emb.astype(bf16))

    # Gate weights split into input / hidden halves, each gate block H_pad wide
    # so every in-kernel gate slice is 128-lane aligned and no structural zeros
    # are streamed.
    w_x = jnp.zeros((E_pad, 3 * H_pad), f32)
    w_h = jnp.zeros((H_pad, 3 * H_pad), f32)
    b_x = jnp.zeros((1, 3 * H_pad), f32)
    b_h = jnp.zeros((1, 3 * H_pad), f32)
    for k in range(3):
        w_x = w_x.at[:E, k * H_pad:k * H_pad + H].set(w_ih[:, k * H:(k + 1) * H])
        w_h = w_h.at[:H, k * H_pad:k * H_pad + H].set(w_hh[:, k * H:(k + 1) * H])
        b_x = b_x.at[0, k * H_pad:k * H_pad + H].set(b_ih[k * H:(k + 1) * H])
        b_h = b_h.at[0, k * H_pad:k * H_pad + H].set(b_hh[k * H:(k + 1) * H])
    w_x = w_x.astype(bf16)
    w_h = w_h.astype(bf16)

    w_out_p = jnp.zeros((H_pad, V_pad), bf16).at[:H, :V].set(w_out.astype(bf16))
    b_out_p = jnp.zeros((1, V_pad), f32).at[0, :V].set(b_out)

    arrays = {"emb": emb_p, "w_x": w_x, "w_h": w_h, "b_x": b_x, "b_h": b_h,
              "w_out": w_out_p, "b_out": b_out_p}
    dims = DecoderDims(E=E, H=H, V=V, E_pad=E_pad, H_pad=H_pad,
                       V_pad=V_pad, TN=TN, vmem_limit=vmem_limit)
    return arrays, dims


# --------------------------------------------------------------------------
# Forward wrapper
# --------------------------------------------------------------------------
@partial(jax.jit, static_argnames=("dims",))
def _decoder_step(source, hidden, arrays, *, dims):
    E, H, V = dims.E, dims.H, dims.V
    E_pad, H_pad, V_pad, TN = dims.E_pad, dims.H_pad, dims.V_pad, dims.TN

    B = source.shape[0]
    B_pad = max(8, _round_up(B, 8))     # fill all 8 f32 sublanes of a vreg

    # Embedding lookup (XLA gather) + eval-mode dropout == identity.
    # TODO(synk): fuse this row gather into the kernel (scalar-prefetched ids +
    #             manual DMA) to save one small HBM round-trip of x per step.
    x = jnp.take(arrays["emb"], source, axis=0)            # (B, E_pad) bf16
    x_p = jnp.zeros((B_pad, E_pad), jnp.bfloat16).at[:B].set(x)

    h0 = hidden.reshape(B, H).astype(jnp.float32)
    h0_p = jnp.zeros((B_pad, H_pad), jnp.float32).at[:B, :H].set(h0)

    n_tiles = V_pad // TN
    resident = lambda shape: pl.BlockSpec(shape, lambda j: (0, 0))

    pred_pad, hnew_pad = pl.pallas_call(
        _gru_decoder_kernel,
        grid=(n_tiles,),
        in_specs=[
            resident((B_pad, E_pad)),                       # x
            resident((B_pad, H_pad)),                       # h0
            resident((E_pad, 3 * H_pad)),                   # W_x
            resident((H_pad, 3 * H_pad)),                   # W_h
            resident((1, 3 * H_pad)),                       # b_ih
            resident((1, 3 * H_pad)),                       # b_hh
            pl.BlockSpec((H_pad, TN), lambda j: (0, j)),    # w_out tile
            pl.BlockSpec((1, TN), lambda j: (0, j)),        # b_out tile
        ],
        out_specs=(
            pl.BlockSpec((B_pad, TN), lambda j: (0, j)),         # logits tile
            pl.BlockSpec((1, B_pad, H_pad), lambda j: (j, 0, 0)),  # h_new slab
        ),
        out_shape=(
            jax.ShapeDtypeStruct((B_pad, V_pad), jnp.float32),
            jax.ShapeDtypeStruct((n_tiles, B_pad, H_pad), jnp.float32),
        ),
        compiler_params=pltpu.CompilerParams(
            # No cross-iteration state -> vocab tiles can shard across the two
            # v7x TensorCores; no-op on single-TC v5e/v6e.
            dimension_semantics=("parallel",),
            vmem_limit_bytes=dims.vmem_limit,
        ),
    )(x_p, h0_p, arrays["w_x"], arrays["w_h"], arrays["b_x"], arrays["b_h"],
      arrays["w_out"], arrays["b_out"])

    pred = pred_pad[:B, :V]
    h_new = hnew_pad[0, :B, :H].reshape(hidden.shape)
    return pred, h_new


def decoder_forward(source, hidden, prep):
    """source: int32 (B,);  hidden: float32 (1, B, H).  Returns (pred, hidden)."""
    arrays, dims = prep
    return _decoder_step(source, hidden, arrays, dims=dims)


# --------------------------------------------------------------------------
# Synthetic params + pure-JAX reference (same bf16 weight cast as the kernel)
# --------------------------------------------------------------------------
def init_params(key, vocab_size, emb_dim, hid_dim):
    """Deterministic synthetic parameters (PyTorch GRU gate order r, z, n)."""
    ks = jax.random.split(key, 7)
    scale = 0.1
    return {
        "embedding": scale * jax.random.normal(ks[0], (vocab_size, emb_dim), jnp.float32),
        "w_ih": scale * jax.random.normal(ks[1], (emb_dim, 3 * hid_dim), jnp.float32),
        "w_hh": scale * jax.random.normal(ks[2], (hid_dim, 3 * hid_dim), jnp.float32),
        "b_ih": scale * jax.random.normal(ks[3], (1, 3 * hid_dim), jnp.float32),
        "b_hh": scale * jax.random.normal(ks[4], (1, 3 * hid_dim), jnp.float32),
        "w_out": scale * jax.random.normal(ks[5], (hid_dim, vocab_size), jnp.float32),
        "b_out": scale * jax.random.normal(ks[6], (1, vocab_size), jnp.float32),
    }


def reference_forward(source, hidden, params):
    """Pure-JAX reference with the same bf16 weight / f32 accumulate recipe."""
    bf16, f32 = jnp.bfloat16, jnp.float32
    emb = params["embedding"].astype(bf16)
    w_ih = params["w_ih"].astype(bf16)
    w_hh = params["w_hh"].astype(bf16)
    w_out = params["w_out"].astype(bf16)

    x = jnp.take(emb, source, axis=0)
    B = source.shape[0]
    h = hidden.reshape(B, -1).astype(f32)
    H = h.shape[-1]

    gi = jnp.dot(x, w_ih, preferred_element_type=f32) + params["b_ih"]
    gh = jnp.dot(h.astype(bf16), w_hh, preferred_element_type=f32) + params["b_hh"]
    r = jax.nn.sigmoid(gi[:, :H] + gh[:, :H])
    z = jax.nn.sigmoid(gi[:, H:2 * H] + gh[:, H:2 * H])
    n = jnp.tanh(gi[:, 2 * H:] + r * gh[:, 2 * H:])
    h_new = (1.0 - z) * n + z * h
    pred = (jnp.dot(h_new.astype(bf16), w_out, preferred_element_type=f32)
            + params["b_out"])
    return pred, h_new.reshape(hidden.shape)


# --------------------------------------------------------------------------
if __name__ == "__main__":
    vocab_size, emb_dim, hid_dim = 64, 32, 32
    batch = 2
    n_layers, n_directions = 1, 1

    key = jax.random.PRNGKey(0)
    k_param, k_src, k_hid = jax.random.split(key, 3)

    params = init_params(k_param, vocab_size, emb_dim, hid_dim)
    source = jax.random.randint(k_src, (batch,), 0, vocab_size, dtype=jnp.int32)
    hidden = 0.1 * jax.random.normal(
        k_hid, (n_layers * n_directions, batch, hid_dim), jnp.float32)

    prep = prepare_decoder_params(params)

    pred, h_new = decoder_forward(source, hidden, prep)
    pred = jax.block_until_ready(pred)
    h_new = jax.block_until_ready(h_new)

    # Sanity check vs. pure-JAX reference (same bf16 weight cast).
    pred_ref, h_ref = reference_forward(source, hidden, params)
    assert pred.shape == (batch, vocab_size)
    assert h_new.shape == (n_layers * n_directions, batch, hid_dim)
    assert jnp.allclose(pred, pred_ref, atol=2e-3, rtol=2e-3), \
        float(jnp.max(jnp.abs(pred - pred_ref)))
    assert jnp.allclose(h_new, h_ref, atol=2e-3, rtol=2e-3), \
        float(jnp.max(jnp.abs(h_new - h_ref)))

    print("KERNEL_OK")
</pallas_src>

<mosaic_0001>
module attributes {stable_mosaic.version = 11 : i64} {
  func.func @_gru_decoder_kernel(%arg0: i32, %arg1: memref<8x128xbf16, #tpu.memory_space<vmem>>, %arg2: memref<8x128xf32, #tpu.memory_space<vmem>>, %arg3: memref<128x384xbf16, #tpu.memory_space<vmem>>, %arg4: memref<128x384xbf16, #tpu.memory_space<vmem>>, %arg5: memref<1x384xf32, #tpu.memory_space<vmem>>, %arg6: memref<1x384xf32, #tpu.memory_space<vmem>>, %arg7: memref<128x128xbf16, #tpu.memory_space<vmem>>, %arg8: memref<1x128xf32, #tpu.memory_space<vmem>>, %arg9: memref<8x128xf32, #tpu.memory_space<vmem>>, %arg10: memref<1x8x128xf32, #tpu.memory_space<vmem>>) attributes {dimension_semantics = [#tpu.dimension_semantics<parallel>], iteration_bounds = array<i64: 1>, scalar_prefetch = 0 : i64, scratch_operands = 0 : i64, tpu.core_type = #tpu.core_type<tc>, window_params = [{pipeline_mode = #tpu.pipeline_mode<synchronous>, transform_indices = @transform_0, window_bounds = array<i64: 8, 128>}, {pipeline_mode = #tpu.pipeline_mode<synchronous>, transform_indices = @transform_1, window_bounds = array<i64: 8, 128>}, {pipeline_mode = #tpu.pipeline_mode<synchronous>, transform_indices = @transform_2, window_bounds = array<i64: 128, 384>}, {pipeline_mode = #tpu.pipeline_mode<synchronous>, transform_indices = @transform_3, window_bounds = array<i64: 128, 384>}, {pipeline_mode = #tpu.pipeline_mode<synchronous>, transform_indices = @transform_4, window_bounds = array<i64: 1, 384>}, {pipeline_mode = #tpu.pipeline_mode<synchronous>, transform_indices = @transform_5, window_bounds = array<i64: 1, 384>}, {transform_indices = @transform_6, window_bounds = array<i64: 128, 128>}, {transform_indices = @transform_7, window_bounds = array<i64: 1, 128>}, {transform_indices = @transform_8, window_bounds = array<i64: 8, 128>}, {transform_indices = @transform_9, window_bounds = array<i64: 1, 8, 128>}]} {
    %c0 = arith.constant 0 : index
    %c0_0 = arith.constant 0 : index
    %0 = vector.load %arg2[%c0, %c0_0] : memref<8x128xf32, #tpu.memory_space<vmem>>, vector<8x128xf32>
    %c0_1 = arith.constant 0 : index
    %c0_2 = arith.constant 0 : index
    %1 = vector.load %arg1[%c0_1, %c0_2] : memref<8x128xbf16, #tpu.memory_space<vmem>>, vector<8x128xbf16>
    %c0_3 = arith.constant 0 : index
    %c0_4 = arith.constant 0 : index
    %2 = vector.load %arg3[%c0_3, %c0_4] : memref<128x384xbf16, #tpu.memory_space<vmem>>, vector<128x384xbf16>
    %cst = arith.constant dense<0.000000e+00> : vector<8x384xf32>
    %3 = tpu.matmul %1, %2, %cst {dimension_numbers = #tpu.dot_dimension_numbers<[1], [0], [0], [1], [0, 0, 1, 1], [], []>} : vector<8x128xbf16>, vector<128x384xbf16>, vector<8x384xf32> -> vector<8x384xf32>
    %c0_5 = arith.constant 0 : index
    %c0_6 = arith.constant 0 : index
    %4 = vector.load %arg5[%c0_5, %c0_6] : memref<1x384xf32, #tpu.memory_space<vmem>>, vector<1x384xf32>
    %5 = vector.broadcast %4 : vector<1x384xf32> to vector<8x384xf32>
    %6 = arith.addf %3, %5 : vector<8x384xf32>
    %7 = arith.truncf %0 : vector<8x128xf32> to vector<8x128xbf16>
    %c0_7 = arith.constant 0 : index
    %c0_8 = arith.constant 0 : index
    %8 = vector.load %arg4[%c0_7, %c0_8] : memref<128x384xbf16, #tpu.memory_space<vmem>>, vector<128x384xbf16>
    %cst_9 = arith.constant dense<0.000000e+00> : vector<8x384xf32>
    %9 = tpu.matmul %7, %8, %cst_9 {dimension_numbers = #tpu.dot_dimension_numbers<[1], [0], [0], [1], [0, 0, 1, 1], [], []>} : vector<8x128xbf16>, vector<128x384xbf16>, vector<8x384xf32> -> vector<8x384xf32>
    %c0_10 = arith.constant 0 : index
    %c0_11 = arith.constant 0 : index
    %10 = vector.load %arg6[%c0_10, %c0_11] : memref<1x384xf32, #tpu.memory_space<vmem>>, vector<1x384xf32>
    %11 = vector.broadcast %10 : vector<1x384xf32> to vector<8x384xf32>
    %12 = arith.addf %9, %11 : vector<8x384xf32>
    %13 = vector.extract_strided_slice %6 {offsets = [0, 0], sizes = [8, 128], strides = [1, 1]} : vector<8x384xf32> to vector<8x128xf32>
    %14 = vector.extract_strided_slice %12 {offsets = [0, 0], sizes = [8, 128], strides = [1, 1]} : vector<8x384xf32> to vector<8x128xf32>
    %15 = arith.addf %13, %14 : vector<8x128xf32>
    %16 = arith.negf %15 : vector<8x128xf32>
    %17 = math.exp %16 : vector<8x128xf32>
    %cst_12 = arith.constant 1.000000e+00 : f32
    %18 = vector.broadcast %cst_12 : f32 to vector<8x128xf32>
    %19 = arith.addf %18, %17 : vector<8x128xf32>
    %20 = arith.divf %18, %19 : vector<8x128xf32>
    %21 = vector.extract_strided_slice %6 {offsets = [0, 128], sizes = [8, 128], strides = [1, 1]} : vector<8x384xf32> to vector<8x128xf32>
    %22 = vector.extract_strided_slice %12 {offsets = [0, 128], sizes = [8, 128], strides = [1, 1]} : vector<8x384xf32> to vector<8x128xf32>
    %23 = arith.addf %21, %22 : vector<8x128xf32>
    %24 = arith.negf %23 : vector<8x128xf32>
    %25 = math.exp %24 : vector<8x128xf32>
    %cst_13 = arith.constant 1.000000e+00 : f32
    %26 = vector.broadcast %cst_13 : f32 to vector<8x128xf32>
    %27 = arith.addf %26, %25 : vector<8x128xf32>
    %28 = arith.divf %26, %27 : vector<8x128xf32>
    %29 = vector.extract_strided_slice %6 {offsets = [0, 256], sizes = [8, 128], strides = [1, 1]} : vector<8x384xf32> to vector<8x128xf32>
    %30 = vector.extract_strided_slice %12 {offsets = [0, 256], sizes = [8, 128], strides = [1, 1]} : vector<8x384xf32> to vector<8x128xf32>
    %31 = arith.mulf %20, %30 : vector<8x128xf32>
    %32 = arith.addf %29, %31 : vector<8x128xf32>
    %33 = math.tanh %32 : vector<8x128xf32>
    %cst_14 = arith.constant 1.000000e+00 : f32
    %34 = vector.broadcast %cst_14 : f32 to vector<8x128xf32>
    %35 = arith.subf %34, %28 : vector<8x128xf32>
    %36 = arith.mulf %35, %33 : vector<8x128xf32>
    %37 = arith.mulf %28, %0 : vector<8x128xf32>
    %38 = arith.addf %36, %37 : vector<8x128xf32>
    %c0_15 = arith.constant 0 : index
    %c0_16 = arith.constant 0 : index
    %c0_17 = arith.constant 0 : index
    %39 = vector.load %arg10[%c0_15, %c0_16, %c0_17] : memref<1x8x128xf32, #tpu.memory_space<vmem>>, vector<1x8x128xf32>
    %40 = vector.shape_cast %39 : vector<1x8x128xf32> to vector<8x128xf32>
    %41 = vector.shape_cast %38 : vector<8x128xf32> to vector<1x8x128xf32>
    tpu.vector_store %arg10[%c0_15, %c0_16, %c0_17], %41 {strides = array<i32>} : memref<1x8x128xf32, #tpu.memory_space<vmem>>, vector<1x8x128xf32>,
    %42 = arith.truncf %38 : vector<8x128xf32> to vector<8x128xbf16>
    %c0_18 = arith.constant 0 : index
    %c0_19 = arith.constant 0 : index
    %43 = vector.load %arg7[%c0_18, %c0_19] : memref<128x128xbf16, #tpu.memory_space<vmem>>, vector<128x128xbf16>
    %cst_20 = arith.constant dense<0.000000e+00> : vector<8x128xf32>
    %44 = tpu.matmul %42, %43, %cst_20 {dimension_numbers = #tpu.dot_dimension_numbers<[1], [0], [0], [1], [0, 0, 1, 1], [], []>} : vector<8x128xbf16>, vector<128x128xbf16>, vector<8x128xf32> -> vector<8x128xf32>
    %c0_21 = arith.constant 0 : index
    %c0_22 = arith.constant 0 : index
    %45 = vector.load %arg8[%c0_21, %c0_22] : memref<1x128xf32, #tpu.memory_space<vmem>>, vector<1x128xf32>
    %46 = vector.broadcast %45 : vector<1x128xf32> to vector<8x128xf32>
    %47 = arith.addf %44, %46 : vector<8x128xf32>
    %c0_23 = arith.constant 0 : index
    %c0_24 = arith.constant 0 : index
    %48 = vector.load %arg9[%c0_23, %c0_24] : memref<8x128xf32, #tpu.memory_space<vmem>>, vector<8x128xf32>
    tpu.vector_store %arg9[%c0_23, %c0_24], %47 {strides = array<i32>} : memref<8x128xf32, #tpu.memory_space<vmem>>, vector<8x128xf32>,
    return
  }
  func.func @transform_0(%arg0: i32) -> (i32, i32) {
    %c0_i32 = arith.constant 0 : i32
    %c0_i32_0 = arith.constant 0 : i32
    %c0_i32_1 = arith.constant 0 : i32
    return %c0_i32, %c0_i32_0 : i32, i32
  }
  func.func @transform_1(%arg0: i32) -> (i32, i32) {
    %c0_i32 = arith.constant 0 : i32
    %c0_i32_0 = arith.constant 0 : i32
    %c0_i32_1 = arith.constant 0 : i32
    return %c0_i32, %c0_i32_0 : i32, i32
  }
  func.func @transform_2(%arg0: i32) -> (i32, i32) {
    %c0_i32 = arith.constant 0 : i32
    %c0_i32_0 = arith.constant 0 : i32
    %c0_i32_1 = arith.constant 0 : i32
    return %c0_i32, %c0_i32_0 : i32, i32
  }
  func.func @transform_3(%arg0: i32) -> (i32, i32) {
    %c0_i32 = arith.constant 0 : i32
    %c0_i32_0 = arith.constant 0 : i32
    %c0_i32_1 = arith.constant 0 : i32
    return %c0_i32, %c0_i32_0 : i32, i32
  }
  func.func @transform_4(%arg0: i32) -> (i32, i32) {
    %c0_i32 = arith.constant 0 : i32
    %c0_i32_0 = arith.constant 0 : i32
    %c0_i32_1 = arith.constant 0 : i32
    return %c0_i32, %c0_i32_0 : i32, i32
  }
  func.func @transform_5(%arg0: i32) -> (i32, i32) {
    %c0_i32 = arith.constant 0 : i32
    %c0_i32_0 = arith.constant 0 : i32
    %c0_i32_1 = arith.constant 0 : i32
    return %c0_i32, %c0_i32_0 : i32, i32
  }
  func.func @transform_6(%arg0: i32) -> (i32, i32) {
    %c0_i32 = arith.constant 0 : i32
    %c0_i32_0 = arith.constant 0 : i32
    return %c0_i32, %arg0 : i32, i32
  }
  func.func @transform_7(%arg0: i32) -> (i32, i32) {
    %c0_i32 = arith.constant 0 : i32
    %c0_i32_0 = arith.constant 0 : i32
    return %c0_i32, %arg0 : i32, i32
  }
  func.func @transform_8(%arg0: i32) -> (i32, i32) {
    %c0_i32 = arith.constant 0 : i32
    %c0_i32_0 = arith.constant 0 : i32
    return %c0_i32, %arg0 : i32, i32
  }
  func.func @transform_9(%arg0: i32) -> (i32, i32, i32) {
    %c0_i32 = arith.constant 0 : i32
    %c0_i32_0 = arith.constant 0 : i32
    %c0_i32_1 = arith.constant 0 : i32
    return %arg0, %c0_i32, %c0_i32_0 : i32, i32, i32
  }
}

</mosaic_0001>

<llo_original>
// kernel: _decoder_step.1
$region0: #{_decoder_step.1}
  #allocation0 [shape = 'u32[]', space=smem, size = 0x4, offset = 0x4, fixed_abs, tag = 'smem constant byte address 0x4 - core index']
  #allocation1 [shape = 'u32[144,128]{1,0:T(1,128)}', space=vmem, size = 0x12000, scoped, tag = 'internal scratch']
  %s0 = inlined_call_operand.vmem [shape: bf16[8,128], index: 0, kind: input, shape index: {}]
  %s1 = inlined_call_operand.vmem [shape: f32[8,128], index: 1, kind: input, shape index: {}]
  %s2 = inlined_call_operand.hbm [shape: bf16[128,384], index: 2, kind: input, shape index: {}]
  %s3 = inlined_call_operand.hbm [shape: bf16[128,384], index: 3, kind: input, shape index: {}]
  %s4 = inlined_call_operand.vmem [shape: f32[1,384], index: 4, kind: input, shape index: {}]
  %s5 = inlined_call_operand.vmem [shape: f32[1,384], index: 5, kind: input, shape index: {}]
  %s6 = inlined_call_operand.hbm [shape: bf16[128,128], index: 6, kind: input, shape index: {}]
  %s7 = inlined_call_operand.vmem [shape: f32[1,128], index: 7, kind: input, shape index: {}]
  %s8 = inlined_call_operand.vmem [shape: f32[8,128], index: 8, kind: output, shape index: {0}]
  %s9 = inlined_call_operand.vmem [shape: f32[1,8,128], index: 9, kind: output, shape index: {1}]
  %10 = xla_tuple %s8, %s9
  %s11 = sld [smem:[#allocation0]]
  $region62: #{_decoder_step.1} parent=0
    _
  %s13 = ssub.s32 1, %s11
  %s14 = scalar_select 0, %s13, %s11
  $region1: #{_decoder_step.1} parent=0
    #allocation2 [shape = 'u8[98304]{0}', space=vmem, size = 0x18000, scoped, tag = 'input window, operand 2, single buffered']
    #allocation3 [shape = 's32[1]{0}', space=sflag, size = 0x4, scoped, tag = 'scoped memory for _decoder_step.1']
    #allocation4 [shape = 'u8[98304]{0}', space=vmem, size = 0x18000, scoped, tag = 'input window, operand 3, single buffered']
    #allocation5 [shape = 's32[1]{0}', space=sflag, size = 0x4, scoped, tag = 'scoped memory for _decoder_step.1']
    #allocation6 [shape = 'u8[32768]{0}', space=vmem, size = 0x8000, scoped, tag = 'input window, operand 6, single buffered']
    %15 = vsyncpa [#allocation3], 0
    %16 = vsyncpa [#allocation5], 0
    // Predicated region
    $region2: #{_decoder_step.1} parent=1 // pred_check
      _
    $region3: #{_decoder_step.1} parent=1 // pred_check_branch
      %18 = sbr.rel (0) target = $region5
    $region4: #{_decoder_step.1} parent=1 // pred_region
      _
    $region5: #{_decoder_step.1} parent=1 // pred_fallthru
      _
    // Predicated region
    $region6: #{_decoder_step.1} parent=1 // pred_check
      _
    $region7: #{_decoder_step.1} parent=1 // pred_check_branch
      %20 = sbr.rel (0) target = $region9
    $region8: #{_decoder_step.1} parent=1 // pred_region
      _
    $region9: #{_decoder_step.1} parent=1 // pred_fallthru
      _
    // Predicated region
    $region10: #{_decoder_step.1} parent=1 // pred_check
      _
    $region11: #{_decoder_step.1} parent=1 // pred_check_branch
      %22 = sbr.rel (0) target = $region13
    $region12: #{_decoder_step.1} parent=1 // pred_region
      %s24 = ssub.s32 3072, 3072
      %25 = vsyncadd [#allocation3], %s24
      %s26 = sshll.u32 [#allocation2], 4
      %s27 = int_to_ptr.vmem [resolvable:$true] %s26
      %32 = dma.hbm_to_vmem [thread:$0]  %s2, 3072, %s27, [#allocation3], 192, 192, 12
    $region13: #{_decoder_step.1} parent=1 // pred_fallthru
      _
    // Predicated region
    $region14: #{_decoder_step.1} parent=1 // pred_check
      _
    $region15: #{_decoder_step.1} parent=1 // pred_check_branch
      %34 = sbr.rel (0) target = $region17
    $region16: #{_decoder_step.1} parent=1 // pred_region
      %s36 = ssub.s32 3072, 3072
      %37 = vsyncadd [#allocation5], %s36
      %s38 = sshll.u32 [#allocation4], 4
      %s39 = int_to_ptr.vmem [resolvable:$true] %s38
      %44 = dma.hbm_to_vmem [thread:$0]  %s3, 3072, %s39, [#allocation5], 192, 192, 12
    $region17: #{_decoder_step.1} parent=1 // pred_fallthru
      _
    // Predicated region
    $region18: #{_decoder_step.1} parent=1 // pred_check
      _
    $region19: #{_decoder_step.1} parent=1 // pred_check_branch
      %46 = sbr.rel (0) target = $region21
    $region20: #{_decoder_step.1} parent=1 // pred_region
      _
    $region21: #{_decoder_step.1} parent=1 // pred_fallthru
      _
    // Predicated region
    $region22: #{_decoder_step.1} parent=1 // pred_check
      _
    $region23: #{_decoder_step.1} parent=1 // pred_check_branch
      %48 = sbr.rel (0) target = $region25
    $region24: #{_decoder_step.1} parent=1 // pred_region
      _
    $region25: #{_decoder_step.1} parent=1 // pred_fallthru
      _
    // Predicated region
    $region26: #{_decoder_step.1} parent=1 // pred_check
      _
    $region27: #{_decoder_step.1} parent=1 // pred_check_branch
      %50 = sbr.rel (0) target = $region29
    $region28: #{_decoder_step.1} parent=1 // pred_region
      %s52 = ssub.s32 1024, 1024
      %53 = vsyncadd [#allocation5], %s52
      %s54 = sshll.u32 [#allocation6], 4
      %s55 = int_to_ptr.vmem [resolvable:$true] %s54
      %60 = dma.hbm_to_vmem [thread:$0]  %s6, 1024, %s55, [#allocation5], 64, 64, 4
    $region29: #{_decoder_step.1} parent=1 // pred_fallthru
      _
    // Predicated region
    $region30: #{_decoder_step.1} parent=1 // pred_check
      _
    $region31: #{_decoder_step.1} parent=1 // pred_check_branch
      %62 = sbr.rel (0) target = $region33
    $region32: #{_decoder_step.1} parent=1 // pred_region
      _
    $region33: #{_decoder_step.1} parent=1 // pred_fallthru
      _
    // Predicated region
    $region34: #{_decoder_step.1} parent=1 // pred_check
      _
    $region35: #{_decoder_step.1} parent=1 // pred_check_branch
      %64 = sbr.rel (0) target = $region37
    $region36: #{_decoder_step.1} parent=1 // pred_region
      %65 = dma.done [#allocation3], 3072
    $region37: #{_decoder_step.1} parent=1 // pred_fallthru
      _
    // Predicated region
    $region38: #{_decoder_step.1} parent=1 // pred_check
      _
    $region39: #{_decoder_step.1} parent=1 // pred_check_branch
      %67 = sbr.rel (0) target = $region41
    $region40: #{_decoder_step.1} parent=1 // pred_region
      %68 = dma.done [#allocation5], 3072
    $region41: #{_decoder_step.1} parent=1 // pred_fallthru
      _
    // Predicated region
    $region42: #{_decoder_step.1} parent=1 // pred_check
      _
    $region43: #{_decoder_step.1} parent=1 // pred_check_branch
      %70 = sbr.rel (0) target = $region45
    $region44: #{_decoder_step.1} parent=1 // pred_region
      %71 = dma.done [#allocation5], 1024
    $region45: #{_decoder_step.1} parent=1 // pred_fallthru
      _
    %v73 = vld [vmem:[%s1] sm:$0xff]
    %v74 = vld [vmem:[%s0] sm:$0xf]
    %v75 = vld [vmem:[#allocation2] sm:$0xff]
    %v76 = vld [vmem:[#allocation2 + $0x8] sm:$0xf]
    %v77 = vld [vmem:[#allocation2 + $0xc] sm:$0xff]
    %v78 = vld [vmem:[#allocation2 + $0x14] sm:$0xf]
    %v79 = vld [vmem:[#allocation2 + $0x18] sm:$0xff]
    %v80 = vld [vmem:[#allocation2 + $0x20] sm:$0xf]
    %v81 = vld [vmem:[#allocation2 + $0x24] sm:$0xff]
    %v82 = vld [vmem:[#allocation2 + $0x2c] sm:$0xf]
    %v83 = vld [vmem:[#allocation2 + $0x30] sm:$0xff]
    %v84 = vld [vmem:[#allocation2 + $0x38] sm:$0xf]
    %v85 = vld [vmem:[#allocation2 + $0x3c] sm:$0xff]
    %v86 = vld [vmem:[#allocation2 + $0x44] sm:$0xf]
    %v87 = vld [vmem:[#allocation2 + $0x48] sm:$0xff]
    %v88 = vld [vmem:[#allocation2 + $0x50] sm:$0xf]
    %v89 = vld [vmem:[#allocation2 + $0x54] sm:$0xff]
    %v90 = vld [vmem:[#allocation2 + $0x5c] sm:$0xf]
    %v91 = vld [vmem:[#allocation2 + $0x60] sm:$0xff]
    %v92 = vld [vmem:[#allocation2 + $0x68] sm:$0xf]
    %v93 = vld [vmem:[#allocation2 + $0x6c] sm:$0xff]
    %v94 = vld [vmem:[#allocation2 + $0x74] sm:$0xf]
    %v95 = vld [vmem:[#allocation2 + $0x78] sm:$0xff]
    %v96 = vld [vmem:[#allocation2 + $0x80] sm:$0xf]
    %v97 = vld [vmem:[#allocation2 + $0x84] sm:$0xff]
    %v98 = vld [vmem:[#allocation2 + $0x8c] sm:$0xf]
    %v99 = vld [vmem:[#allocation2 + $0x90] sm:$0xff]
    %v100 = vld [vmem:[#allocation2 + $0x98] sm:$0xf]
    %v101 = vld [vmem:[#allocation2 + $0x9c] sm:$0xff]
    %v102 = vld [vmem:[#allocation2 + $0xa4] sm:$0xf]
    %v103 = vld [vmem:[#allocation2 + $0xa8] sm:$0xff]
    %v104 = vld [vmem:[#allocation2 + $0xb0] sm:$0xf]
    %v105 = vld [vmem:[#allocation2 + $0xb4] sm:$0xff]
    %v106 = vld [vmem:[#allocation2 + $0xbc] sm:$0xf]
    %v107 = vld [vmem:[%s4] sm:$0x7]
    %v109 = vlaneseq
    %v110 = vshrl.u32 %v109, 7
    %v111 = vsub.s32 0, %v110
    %v112 = vrot.slane %v107, %v111
    %v113 = vlaneseq
    %v114 = vshrl.u32 %v113, 7
    %v115 = vsub.s32 1, %v114
    %v116 = vrot.slane %v107, %v115
    %v117 = vlaneseq
    %v118 = vshrl.u32 %v117, 7
    %v119 = vsub.s32 2, %v118
    %v120 = vrot.slane %v107, %v119
    %v156 = vunpack.c.l.b16 %v75
    %v157 = vunpack.c.h.b16 %v75
    %v158 = vunpack.c.l.b16 %v76
    %v159 = vunpack.c.l.b16 %v77
    %v160 = vunpack.c.h.b16 %v77
    %v161 = vunpack.c.l.b16 %v78
    %v162 = vunpack.c.l.b16 %v79
    %v163 = vunpack.c.h.b16 %v79
    %v164 = vunpack.c.l.b16 %v80
    %v165 = vunpack.c.l.b16 %v81
    %v166 = vunpack.c.h.b16 %v81
    %v167 = vunpack.c.l.b16 %v82
    %v168 = vunpack.c.l.b16 %v83
    %v169 = vunpack.c.h.b16 %v83
    %v170 = vunpack.c.l.b16 %v84
    %v171 = vunpack.c.l.b16 %v85
    %v172 = vunpack.c.h.b16 %v85
    %v173 = vunpack.c.l.b16 %v86
    %v174 = vunpack.c.l.b16 %v87
    %v175 = vunpack.c.h.b16 %v87
    %v176 = vunpack.c.l.b16 %v88
    %v177 = vunpack.c.l.b16 %v89
    %v178 = vunpack.c.h.b16 %v89
    %v179 = vunpack.c.l.b16 %v90
    %v180 = vunpack.c.l.b16 %v91
    %v181 = vunpack.c.h.b16 %v91
    %v182 = vunpack.c.l.b16 %v92
    %v183 = vunpack.c.l.b16 %v93
    %v184 = vunpack.c.h.b16 %v93
    %v185 = vunpack.c.l.b16 %v94
    %v186 = vunpack.c.l.b16 %v95
    %v187 = vunpack.c.h.b16 %v95
    %v188 = vunpack.c.l.b16 %v96
    %v189 = vunpack.c.l.b16 %v97
    %v190 = vunpack.c.h.b16 %v97
    %v191 = vunpack.c.l.b16 %v98
    %v192 = vunpack.c.l.b16 %v99
    %v193 = vunpack.c.h.b16 %v99
    %v194 = vunpack.c.l.b16 %v100
    %v195 = vunpack.c.l.b16 %v101
    %v196 = vunpack.c.h.b16 %v101
    %v197 = vunpack.c.l.b16 %v102
    %v198 = vunpack.c.l.b16 %v103
    %v199 = vunpack.c.h.b16 %v103
    %v200 = vunpack.c.l.b16 %v104
    %v201 = vunpack.c.l.b16 %v105
    %v202 = vunpack.c.h.b16 %v105
    %v203 = vunpack.c.l.b16 %v106
    %v204 = vpack.c.b16 %v159, %v156
    %v205 = vpack.c.b16 %v160, %v157
    %v206 = vpack.c.b16 %v161, %v158
    %v207 = vpack.c.b16 %v165, %v162
    %v208 = vpack.c.b16 %v166, %v163
    %v209 = vpack.c.b16 %v167, %v164
    %v210 = vpack.c.b16 %v171, %v168
    %v211 = vpack.c.b16 %v172, %v169
    %v212 = vpack.c.b16 %v173, %v170
    %v213 = vpack.c.b16 %v177, %v174
    %v214 = vpack.c.b16 %v178, %v175
    %v215 = vpack.c.b16 %v179, %v176
    %v216 = vpack.c.b16 %v183, %v180
    %v217 = vpack.c.b16 %v184, %v181
    %v218 = vpack.c.b16 %v185, %v182
    %v219 = vpack.c.b16 %v189, %v186
    %v220 = vpack.c.b16 %v190, %v187
    %v221 = vpack.c.b16 %v191, %v188
    %v222 = vpack.c.b16 %v195, %v192
    %v223 = vpack.c.b16 %v196, %v193
    %v224 = vpack.c.b16 %v197, %v194
    %v225 = vpack.c.b16 %v201, %v198
    %v226 = vpack.c.b16 %v202, %v199
    %v227 = vpack.c.b16 %v203, %v200
    %252 = vmatprep.subr.bf16.mxu0 %v226
    %253 = vmatpush1.bf16.msra.mxu0 %v225
    %254 = vmatprep.subr.bf16.mxu0 %v223
    %255 = vmatpush1.bf16.msra.mxu0 %v222
    %256 = vmatprep.subr.bf16.mxu0 %v220
    %257 = vmatpush1.bf16.msra.mxu0 %v219
    %258 = vmatprep.subr.bf16.mxu0 %v217
    %259 = vmatpush1.bf16.msra.mxu0 %v216
    %260 = vmatprep.subr.bf16.mxu0 %v214
    %261 = vmatpush1.bf16.msra.mxu0 %v213
    %262 = vmatprep.subr.bf16.mxu0 %v211
    %263 = vmatpush1.bf16.msra.mxu0 %v210
    %264 = vmatprep.subr.bf16.mxu0 %v208
    %265 = vmatpush1.bf16.msra.mxu0 %v207
    %266 = vmatprep.subr.bf16.mxu0 %v205
    %267 = vmatpush1.bf16.msra.mxu0 %v204
    %268 = vmatprep.subr.bf16.mxu0 0
    %269 = vmatpush2.bf16.msra.mxu0 0
    %270 = vmatprep.subr.bf16.mxu0 0
    %271 = vmatpush2.bf16.msra.mxu0 0
    %272 = vmatprep.subr.bf16.mxu0 0
    %273 = vmatpush2.bf16.msra.mxu0 0
    %274 = vmatprep.subr.bf16.mxu0 0
    %275 = vmatpush2.bf16.msra.mxu0 0
    %276 = vmatprep.subr.bf16.mxu0 0
    %277 = vmatpush2.bf16.msra.mxu0 0
    %278 = vmatprep.subr.bf16.mxu0 0
    %279 = vmatpush2.bf16.msra.mxu0 0
    %280 = vmatprep.subr.bf16.mxu0 0
    %281 = vmatpush2.bf16.msra.mxu0 0
    %282 = vmatprep.subr.bf16.mxu0 0
    %283 = vmatpush2.bf16.msra.mxu0 0
    %284 = vmatprep.mubr.bf16.mxu0 0
    %285 = vmatmul.mubr.bf16.gmra.mxu0 %v74
    %v286 = vpop.f32.mrf.mxu0
    %v287 = vadd.f32 %v112, %v286
    %v288 = vpop.f32.mrf.mxu0
    %v289 = vadd.f32 %v116, %v288
    %v290 = vpop.f32.mrf.mxu0
    %v291 = vpop.f32.mrf.mxu0
    %292 = vdwg.mxu0
    %293 = vmatprep.subr.bf16.mxu0 0
    %294 = vmatpush1.bf16.msra.mxu0 %v227
    %295 = vmatprep.subr.bf16.mxu0 0
    %296 = vmatpush1.bf16.msra.mxu0 %v224
    %297 = vmatprep.subr.bf16.mxu0 0
    %298 = vmatpush1.bf16.msra.mxu0 %v221
    %299 = vmatprep.subr.bf16.mxu0 0
    %300 = vmatpush1.bf16.msra.mxu0 %v218
    %301 = vmatprep.subr.bf16.mxu0 0
    %302 = vmatpush1.bf16.msra.mxu0 %v215
    %303 = vmatprep.subr.bf16.mxu0 0
    %304 = vmatpush1.bf16.msra.mxu0 %v212
    %305 = vmatprep.subr.bf16.mxu0 0
    %306 = vmatpush1.bf16.msra.mxu0 %v209
    %307 = vmatprep.subr.bf16.mxu0 0
    %308 = vmatpush1.bf16.msra.mxu0 %v206
    %309 = vmatprep.subr.bf16.mxu0 0
    %310 = vmatpush2.bf16.msra.mxu0 0
    %311 = vmatprep.subr.bf16.mxu0 0
    %312 = vmatpush2.bf16.msra.mxu0 0
    %313 = vmatprep.subr.bf16.mxu0 0
    %314 = vmatpush2.bf16.msra.mxu0 0
    %315 = vmatprep.subr.bf16.mxu0 0
    %316 = vmatpush2.bf16.msra.mxu0 0
    %317 = vmatprep.subr.bf16.mxu0 0
    %318 = vmatpush2.bf16.msra.mxu0 0
    %319 = vmatprep.subr.bf16.mxu0 0
    %320 = vmatpush2.bf16.msra.mxu0 0
    %321 = vmatprep.subr.bf16.mxu0 0
    %322 = vmatpush2.bf16.msra.mxu0 0
    %323 = vmatprep.subr.bf16.mxu0 0
    %324 = vmatpush2.bf16.msra.mxu0 0
    %325 = vmatprep.mubr.bf16.mxu0 0
    %326 = vmatmul.mubr.bf16.gmra.mxu0 %v74
    %v327 = vpop.f32.mrf.mxu0
    %v328 = vadd.f32 %v120, %v327
    %v329 = vpop.f32.mrf.mxu0
    %v330 = vpop.f32.mrf.mxu0
    %v331 = vpop.f32.mrf.mxu0
    %332 = vdwg.mxu0
    %v333 = vpack.c.bf16 %v73, %v73
    %v334 = vld [vmem:[#allocation4] sm:$0xff]
    %v335 = vld [vmem:[#allocation4 + $0x8] sm:$0xf]
    %v336 = vld [vmem:[#allocation4 + $0xc] sm:$0xff]
    %v337 = vld [vmem:[#allocation4 + $0x14] sm:$0xf]
    %v338 = vld [vmem:[#allocation4 + $0x18] sm:$0xff]
    %v339 = vld [vmem:[#allocation4 + $0x20] sm:$0xf]
    %v340 = vld [vmem:[#allocation4 + $0x24] sm:$0xff]
    %v341 = vld [vmem:[#allocation4 + $0x2c] sm:$0xf]
    %v342 = vld [vmem:[#allocation4 + $0x30] sm:$0xff]
    %v343 = vld [vmem:[#allocation4 + $0x38] sm:$0xf]
    %v344 = vld [vmem:[#allocation4 + $0x3c] sm:$0xff]
    %v345 = vld [vmem:[#allocation4 + $0x44] sm:$0xf]
    %v346 = vld [vmem:[#allocation4 + $0x48] sm:$0xff]
    %v347 = vld [vmem:[#allocation4 + $0x50] sm:$0xf]
    %v348 = vld [vmem:[#allocation4 + $0x54] sm:$0xff]
    %v349 = vld [vmem:[#allocation4 + $0x5c] sm:$0xf]
    %v350 = vld [vmem:[#allocation4 + $0x60] sm:$0xff]
    %v351 = vld [vmem:[#allocation4 + $0x68] sm:$0xf]
    %v352 = vld [vmem:[#allocation4 + $0x6c] sm:$0xff]
    %v353 = vld [vmem:[#allocation4 + $0x74] sm:$0xf]
    %v354 = vld [vmem:[#allocation4 + $0x78] sm:$0xff]
    %v355 = vld [vmem:[#allocation4 + $0x80] sm:$0xf]
    %v356 = vld [vmem:[#allocation4 + $0x84] sm:$0xff]
    %v357 = vld [vmem:[#allocation4 + $0x8c] sm:$0xf]
    %v358 = vld [vmem:[#allocation4 + $0x90] sm:$0xff]
    %v359 = vld [vmem:[#allocation4 + $0x98] sm:$0xf]
    %v360 = vld [vmem:[#allocation4 + $0x9c] sm:$0xff]
    %v361 = vld [vmem:[#allocation4 + $0xa4] sm:$0xf]
    %v362 = vld [vmem:[#allocation4 + $0xa8] sm:$0xff]
    %v363 = vld [vmem:[#allocation4 + $0xb0] sm:$0xf]
    %v364 = vld [vmem:[#allocation4 + $0xb4] sm:$0xff]
    %v365 = vld [vmem:[#allocation4 + $0xbc] sm:$0xf]
    %v366 = vld [vmem:[%s5] sm:$0x7]
    %v368 = vlaneseq
    %v369 = vshrl.u32 %v368, 7
    %v370 = vsub.s32 0, %v369
    %v371 = vrot.slane %v366, %v370
    %v372 = vlaneseq
    %v373 = vshrl.u32 %v372, 7
    %v374 = vsub.s32 1, %v373
    %v375 = vrot.slane %v366, %v374
    %v376 = vlaneseq
    %v377 = vshrl.u32 %v376, 7
    %v378 = vsub.s32 2, %v377
    %v379 = vrot.slane %v366, %v378
    %v415 = vunpack.c.l.b16 %v334
    %v416 = vunpack.c.h.b16 %v334
    %v417 = vunpack.c.l.b16 %v335
    %v418 = vunpack.c.l.b16 %v336
    %v419 = vunpack.c.h.b16 %v336
    %v420 = vunpack.c.l.b16 %v337
    %v421 = vunpack.c.l.b16 %v338
    %v422 = vunpack.c.h.b16 %v338
    %v423 = vunpack.c.l.b16 %v339
    %v424 = vunpack.c.l.b16 %v340
    %v425 = vunpack.c.h.b16 %v340
    %v426 = vunpack.c.l.b16 %v341
    %v427 = vunpack.c.l.b16 %v342
    %v428 = vunpack.c.h.b16 %v342
    %v429 = vunpack.c.l.b16 %v343
    %v430 = vunpack.c.l.b16 %v344
    %v431 = vunpack.c.h.b16 %v344
    %v432 = vunpack.c.l.b16 %v345
    %v433 = vunpack.c.l.b16 %v346
    %v434 = vunpack.c.h.b16 %v346
    %v435 = vunpack.c.l.b16 %v347
    %v436 = vunpack.c.l.b16 %v348
    %v437 = vunpack.c.h.b16 %v348
    %v438 = vunpack.c.l.b16 %v349
    %v439 = vunpack.c.l.b16 %v350
    %v440 = vunpack.c.h.b16 %v350
    %v441 = vunpack.c.l.b16 %v351
    %v442 = vunpack.c.l.b16 %v352
    %v443 = vunpack.c.h.b16 %v352
    %v444 = vunpack.c.l.b16 %v353
    %v445 = vunpack.c.l.b16 %v354
    %v446 = vunpack.c.h.b16 %v354
    %v447 = vunpack.c.l.b16 %v355
    %v448 = vunpack.c.l.b16 %v356
    %v449 = vunpack.c.h.b16 %v356
    %v450 = vunpack.c.l.b16 %v357
    %v451 = vunpack.c.l.b16 %v358
    %v452 = vunpack.c.h.b16 %v358
    %v453 = vunpack.c.l.b16 %v359
    %v454 = vunpack.c.l.b16 %v360
    %v455 = vunpack.c.h.b16 %v360
    %v456 = vunpack.c.l.b16 %v361
    %v457 = vunpack.c.l.b16 %v362
    %v458 = vunpack.c.h.b16 %v362
    %v459 = vunpack.c.l.b16 %v363
    %v460 = vunpack.c.l.b16 %v364
    %v461 = vunpack.c.h.b16 %v364
    %v462 = vunpack.c.l.b16 %v365
    %v463 = vpack.c.b16 %v418, %v415
    %v464 = vpack.c.b16 %v419, %v416
    %v465 = vpack.c.b16 %v420, %v417
    %v466 = vpack.c.b16 %v424, %v421
    %v467 = vpack.c.b16 %v425, %v422
    %v468 = vpack.c.b16 %v426, %v423
    %v469 = vpack.c.b16 %v430, %v427
    %v470 = vpack.c.b16 %v431, %v428
    %v471 = vpack.c.b16 %v432, %v429
    %v472 = vpack.c.b16 %v436, %v433
    %v473 = vpack.c.b16 %v437, %v434
    %v474 = vpack.c.b16 %v438, %v435
    %v475 = vpack.c.b16 %v442, %v439
    %v476 = vpack.c.b16 %v443, %v440
    %v477 = vpack.c.b16 %v444, %v441
    %v478 = vpack.c.b16 %v448, %v445
    %v479 = vpack.c.b16 %v449, %v446
    %v480 = vpack.c.b16 %v450, %v447
    %v481 = vpack.c.b16 %v454, %v451
    %v482 = vpack.c.b16 %v455, %v452
    %v483 = vpack.c.b16 %v456, %v453
    %v484 = vpack.c.b16 %v460, %v457
    %v485 = vpack.c.b16 %v461, %v458
    %v486 = vpack.c.b16 %v462, %v459
    %511 = vmatprep.subr.bf16.mxu0 %v485
    %512 = vmatpush1.bf16.msra.mxu0 %v484
    %513 = vmatprep.subr.bf16.mxu0 %v482
    %514 = vmatpush1.bf16.msra.mxu0 %v481
    %515 = vmatprep.subr.bf16.mxu0 %v479
    %516 = vmatpush1.bf16.msra.mxu0 %v478
    %517 = vmatprep.subr.bf16.mxu0 %v476
    %518 = vmatpush1.bf16.msra.mxu0 %v475
    %519 = vmatprep.subr.bf16.mxu0 %v473
    %520 = vmatpush1.bf16.msra.mxu0 %v472
    %521 = vmatprep.subr.bf16.mxu0 %v470
    %522 = vmatpush1.bf16.msra.mxu0 %v469
    %523 = vmatprep.subr.bf16.mxu0 %v467
    %524 = vmatpush1.bf16.msra.mxu0 %v466
    %525 = vmatprep.subr.bf16.mxu0 %v464
    %526 = vmatpush1.bf16.msra.mxu0 %v463
    %527 = vmatprep.subr.bf16.mxu0 0
    %528 = vmatpush2.bf16.msra.mxu0 0
    %529 = vmatprep.subr.bf16.mxu0 0
    %530 = vmatpush2.bf16.msra.mxu0 0
    %531 = vmatprep.subr.bf16.mxu0 0
    %532 = vmatpush2.bf16.msra.mxu0 0
    %533 = vmatprep.subr.bf16.mxu0 0
    %534 = vmatpush2.bf16.msra.mxu0 0
    %535 = vmatprep.subr.bf16.mxu0 0
    %536 = vmatpush2.bf16.msra.mxu0 0
    %537 = vmatprep.subr.bf16.mxu0 0
    %538 = vmatpush2.bf16.msra.mxu0 0
    %539 = vmatprep.subr.bf16.mxu0 0
    %540 = vmatpush2.bf16.msra.mxu0 0
    %541 = vmatprep.subr.bf16.mxu0 0
    %542 = vmatpush2.bf16.msra.mxu0 0
    %543 = vmatprep.mubr.bf16.mxu0 0
    %544 = vmatmul.mubr.bf16.gmra.mxu0 %v333
    %v545 = vpop.f32.mrf.mxu0
    %v546 = vadd.f32 %v371, %v545
    %v547 = vpop.f32.mrf.mxu0
    %v548 = vadd.f32 %v375, %v547
    %v549 = vpop.f32.mrf.mxu0
    %v550 = vpop.f32.mrf.mxu0
    %551 = vdwg.mxu0
    %552 = vmatprep.subr.bf16.mxu0 0
    %553 = vmatpush1.bf16.msra.mxu0 %v486
    %554 = vmatprep.subr.bf16.mxu0 0
    %555 = vmatpush1.bf16.msra.mxu0 %v483
    %556 = vmatprep.subr.bf16.mxu0 0
    %557 = vmatpush1.bf16.msra.mxu0 %v480
    %558 = vmatprep.subr.bf16.mxu0 0
    %559 = vmatpush1.bf16.msra.mxu0 %v477
    %560 = vmatprep.subr.bf16.mxu0 0
    %561 = vmatpush1.bf16.msra.mxu0 %v474
    %562 = vmatprep.subr.bf16.mxu0 0
    %563 = vmatpush1.bf16.msra.mxu0 %v471
    %564 = vmatprep.subr.bf16.mxu0 0
    %565 = vmatpush1.bf16.msra.mxu0 %v468
    %566 = vmatprep.subr.bf16.mxu0 0
    %567 = vmatpush1.bf16.msra.mxu0 %v465
    %568 = vmatprep.subr.bf16.mxu0 0
    %569 = vmatpush2.bf16.msra.mxu0 0
    %570 = vmatprep.subr.bf16.mxu0 0
    %571 = vmatpush2.bf16.msra.mxu0 0
    %572 = vmatprep.subr.bf16.mxu0 0
    %573 = vmatpush2.bf16.msra.mxu0 0
    %574 = vmatprep.subr.bf16.mxu0 0
    %575 = vmatpush2.bf16.msra.mxu0 0
    %576 = vmatprep.subr.bf16.mxu0 0
    %577 = vmatpush2.bf16.msra.mxu0 0
    %578 = vmatprep.subr.bf16.mxu0 0
    %579 = vmatpush2.bf16.msra.mxu0 0
    %580 = vmatprep.subr.bf16.mxu0 0
    %581 = vmatpush2.bf16.msra.mxu0 0
    %582 = vmatprep.subr.bf16.mxu0 0
    %583 = vmatpush2.bf16.msra.mxu0 0
    %584 = vmatprep.mubr.bf16.mxu0 0
    %585 = vmatmul.mubr.bf16.gmra.mxu0 %v333
    %v586 = vpop.f32.mrf.mxu0
    %v587 = vadd.f32 %v379, %v586
    %v588 = vpop.f32.mrf.mxu0
    %v589 = vpop.f32.mrf.mxu0
    %v590 = vpop.f32.mrf.mxu0
    %591 = vdwg.mxu0
    %v592 = vadd.f32 %v287, %v546
    %v593 = vxor.u32 %v592, 2147483648
    %v594 = vmul.f32 %v593, 1.442695
    %v595 = vpow.pop %v594
    %v596 = vadd.f32 %v595, 1.0
    %v597 = vrcp.pop %v596
    %v598 = vmul.f32 1.0, %v597
    %v599 = vadd.f32 %v289, %v548
    %v600 = vxor.u32 %v599, 2147483648
    %v601 = vmul.f32 %v600, 1.442695
    %v602 = vpow.pop %v601
    %v603 = vadd.f32 %v602, 1.0
    %v604 = vrcp.pop %v603
    %v605 = vmul.f32 1.0, %v604
    %v606 = vmul.f32 %v598, %v587
    %v607 = vadd.f32 %v328, %v606
    %v608 = vtanh.pop %v607
    %v609 = vsub.f32 1.0, %v605
    %v610 = vmul.f32 %v609, %v608
    %v611 = vmul.f32 %v605, %v73
    %v612 = vadd.f32 %v610, %v611
    %613 = vst [vmem:[%s9] sm:$0xff] %v612
    %v614 = vpack.c.bf16 %v612, %v612
    %v615 = vld [vmem:[#allocation6] sm:$0xf]
    %v616 = vld [vmem:[#allocation6 + $0x4] sm:$0xf]
    %v617 = vld [vmem:[#allocation6 + $0x8] sm:$0xf]
    %v618 = vld [vmem:[#allocation6 + $0xc] sm:$0xf]
    %v619 = vld [vmem:[#allocation6 + $0x10] sm:$0xf]
    %v620 = vld [vmem:[#allocation6 + $0x14] sm:$0xf]
    %v621 = vld [vmem:[#allocation6 + $0x18] sm:$0xf]
    %v622 = vld [vmem:[#allocation6 + $0x1c] sm:$0xf]
    %v623 = vld [vmem:[#allocation6 + $0x20] sm:$0xf]
    %v624 = vld [vmem:[#allocation6 + $0x24] sm:$0xf]
    %v625 = vld [vmem:[#allocation6 + $0x28] sm:$0xf]
    %v626 = vld [vmem:[#allocation6 + $0x2c] sm:$0xf]
    %v627 = vld [vmem:[#allocation6 + $0x30] sm:$0xf]
    %v628 = vld [vmem:[#allocation6 + $0x34] sm:$0xf]
    %v629 = vld [vmem:[#allocation6 + $0x38] sm:$0xf]
    %v630 = vld [vmem:[#allocation6 + $0x3c] sm:$0xf]
    %v631 = vld [vmem:[%s7] sm:$0x1]
    %v633 = vlaneseq
    %v634 = vshrl.u32 %v633, 7
    %v635 = vsub.s32 0, %v634
    %v636 = vrot.slane %v631, %v635
    %v654 = vunpack.c.l.b16 %v615
    %v655 = vunpack.c.l.b16 %v616
    %v656 = vunpack.c.l.b16 %v617
    %v657 = vunpack.c.l.b16 %v618
    %v658 = vunpack.c.l.b16 %v619
    %v659 = vunpack.c.l.b16 %v620
    %v660 = vunpack.c.l.b16 %v621
    %v661 = vunpack.c.l.b16 %v622
    %v662 = vunpack.c.l.b16 %v623
    %v663 = vunpack.c.l.b16 %v624
    %v664 = vunpack.c.l.b16 %v625
    %v665 = vunpack.c.l.b16 %v626
    %v666 = vunpack.c.l.b16 %v627
    %v667 = vunpack.c.l.b16 %v628
    %v668 = vunpack.c.l.b16 %v629
    %v669 = vunpack.c.l.b16 %v630
    %v670 = vpack.c.b16 %v655, %v654
    %v671 = vpack.c.b16 %v657, %v656
    %v672 = vpack.c.b16 %v659, %v658
    %v673 = vpack.c.b16 %v661, %v660
    %v674 = vpack.c.b16 %v663, %v662
    %v675 = vpack.c.b16 %v665, %v664
    %v676 = vpack.c.b16 %v667, %v666
    %v677 = vpack.c.b16 %v669, %v668
    %686 = vmatprep.subr.bf16.mxu0 0
    %687 = vmatpush1.bf16.msra.mxu0 %v677
    %688 = vmatprep.subr.bf16.mxu0 0
    %689 = vmatpush1.bf16.msra.mxu0 %v676
    %690 = vmatprep.subr.bf16.mxu0 0
    %691 = vmatpush1.bf16.msra.mxu0 %v675
    %692 = vmatprep.subr.bf16.mxu0 0
    %693 = vmatpush1.bf16.msra.mxu0 %v674
    %694 = vmatprep.subr.bf16.mxu0 0
    %695 = vmatpush1.bf16.msra.mxu0 %v673
    %696 = vmatprep.subr.bf16.mxu0 0
    %697 = vmatpush1.bf16.msra.mxu0 %v672
    %698 = vmatprep.subr.bf16.mxu0 0
    %699 = vmatpush1.bf16.msra.mxu0 %v671
    %700 = vmatprep.subr.bf16.mxu0 0
    %701 = vmatpush1.bf16.msra.mxu0 %v670
    %702 = vmatprep.subr.bf16.mxu0 0
    %703 = vmatpush2.bf16.msra.mxu0 0
    %704 = vmatprep.subr.bf16.mxu0 0
    %705 = vmatpush2.bf16.msra.mxu0 0
    %706 = vmatprep.subr.bf16.mxu0 0
    %707 = vmatpush2.bf16.msra.mxu0 0
    %708 = vmatprep.subr.bf16.mxu0 0
    %709 = vmatpush2.bf16.msra.mxu0 0
    %710 = vmatprep.subr.bf16.mxu0 0
    %711 = vmatpush2.bf16.msra.mxu0 0
    %712 = vmatprep.subr.bf16.mxu0 0
    %713 = vmatpush2.bf16.msra.mxu0 0
    %714 = vmatprep.subr.bf16.mxu0 0
    %715 = vmatpush2.bf16.msra.mxu0 0
    %716 = vmatprep.subr.bf16.mxu0 0
    %717 = vmatpush2.bf16.msra.mxu0 0
    %718 = vmatprep.mubr.bf16.mxu0 0
    %719 = vmatmul.mubr.bf16.gmra.mxu0 %v614
    %v720 = vpop.f32.mrf.mxu0
    %v721 = vadd.f32 %v636, %v720
    %v722 = vpop.f32.mrf.mxu0
    %v723 = vpop.f32.mrf.mxu0
    %v724 = vpop.f32.mrf.mxu0
    %725 = vdwg.mxu0
    %726 = vst [vmem:[%s8] sm:$0xff] %v721
    // Predicated region
    $region46: #{_decoder_step.1} parent=1 // pred_check
      _
    $region47: #{_decoder_step.1} parent=1 // pred_check_branch
      %728 = sbr.rel (0) target = $region49
    $region48: #{_decoder_step.1} parent=1 // pred_region
      _
    $region49: #{_decoder_step.1} parent=1 // pred_fallthru
      _
    // Predicated region
    $region50: #{_decoder_step.1} parent=1 // pred_check
      _
    $region51: #{_decoder_step.1} parent=1 // pred_check_branch
      %730 = sbr.rel (0) target = $region53
    $region52: #{_decoder_step.1} parent=1 // pred_region
      _
    $region53: #{_decoder_step.1} parent=1 // pred_fallthru
      _
    // Predicated region
    $region54: #{_decoder_step.1} parent=1 // pred_check
      _
    $region55: #{_decoder_step.1} parent=1 // pred_check_branch
      %732 = sbr.rel (0) target = $region57
    $region56: #{_decoder_step.1} parent=1 // pred_region
      _
    $region57: #{_decoder_step.1} parent=1 // pred_fallthru
      _
    // Predicated region
    $region58: #{_decoder_step.1} parent=1 // pred_check
      _
    $region59: #{_decoder_step.1} parent=1 // pred_check_branch
      %734 = sbr.rel (0) target = $region61
    $region60: #{_decoder_step.1} parent=1 // pred_region
      _
    $region61: #{_decoder_step.1} parent=1 // pred_fallthru
      _
    %735 = vsyncpa [#allocation3], 1
    %736 = vsyncpa [#allocation5], 1

</llo_original>
